<compile_context>
chip_gen: v7x
topology: tpu7x:2x2x1
jax: 0.10.0
libtpu: 0.0.40
codegen_flags: <defaults>
</compile_context>

<pallas_src>
import functools

import jax
import jax.numpy as jnp
from jax.experimental import pallas as pl
from jax.experimental.pallas import tpu as pltpu

ALPHA = 0.25
GAMMA = 2.0


def _focal_loss_kernel(inputs_ref, targets_ref, out_ref, acc_ref, *,
                       gamma, n_rows, c, block_n, sub_n, tiles_per_split):
    s = pl.program_id(0)            # "parallel" split (megacore on v7x)
    t = pl.program_id(1)            # "arbitrary" reduction step within split

    @pl.when(t == 0)
    def _():
        acc_ref[...] = jnp.zeros_like(acc_ref)

    # Unclamped tile index: for the clamped duplicate step of an odd tile
    # count this points past N, so the global-row mask zeroes its contribution.
    tile_idx = s * tiles_per_split + t
    row0 = tile_idx * block_n

    n_chunks = block_n // sub_n
    in_zero = jnp.array(0, dtype=inputs_ref.dtype)

    # Loop-invariant iotas, hoisted out of the chunk loop.
    col = jax.lax.broadcasted_iota(jnp.int32, (sub_n, c), 1)
    row_iota = jax.lax.broadcasted_iota(jnp.int32, (sub_n, 1), 0)

    def process(logp, tgt, chunk_row0):
        # One-hot gather of inputs[i, targets[i]] in the input's native dtype
        # (exact: at most one non-zero per row).
        masked = jnp.where(col == tgt, logp, in_zero)               # (sub_n, c)
        if c % 128 == 0 and c >= 256:
            # Two-stage reduce: fold lane groups with plain VPU adds first
            # (lane-aligned static slices, no relayout), then one XLU reduce.
            folded = masked[:, 0:128]
            for g in range(1, c // 128):
                folded = folded + masked[:, g * 128:(g + 1) * 128]
            picked = jnp.sum(folded, axis=1, keepdims=True)
        else:
            picked = jnp.sum(masked, axis=1, keepdims=True)
        picked = picked.astype(jnp.float32)                         # (sub_n, 1)

        # Zero rows beyond N (tile padding / duplicated clamped split step).
        global_row = row0 + chunk_row0 + row_iota
        picked = jnp.where(global_row < n_rows, picked, 0.0)

        ce = -picked                          # CE loss per row
        pt = jnp.exp(picked)                  # pt = exp(-CE)
        one_minus_pt = 1.0 - pt
        if gamma == 2.0:                      # default: one VPU mul, no pow
            mod = one_minus_pt * one_minus_pt
        elif gamma == 1.0:
            mod = one_minus_pt
        elif gamma == 0.0:
            mod = jnp.ones_like(one_minus_pt)
        else:
            mod = jnp.power(jnp.maximum(one_minus_pt, 0.0), gamma)
        # alpha and 1/N are applied once in the wrapper (f32).
        acc_ref[...] += mod * ce

    if n_chunks == 1:
        process(inputs_ref[...], targets_ref[...], 0)
    else:
        @pl.loop(0, n_chunks)
        def _(ci):
            r = pl.multiple_of(ci * sub_n, sub_n)
            process(inputs_ref[pl.ds(r, sub_n), :],
                    targets_ref[pl.ds(r, sub_n), :],
                    ci * sub_n)

    @pl.when(t == pl.num_programs(1) - 1)
    def _():
        # Lane-dense (8, 128) output tile; the wrapper reads element [0, 0].
        out_ref[...] = jnp.broadcast_to(jnp.sum(acc_ref[...]), (1, 8, 128))


def _vmem_capacity_bytes():
    """Physical VMEM per TensorCore; conservative v7x (64 MiB) fallback."""
    cap = 64 << 20
    try:
        info = pltpu.get_tpu_info()
        for name in ("vmem_capacity_bytes", "vmem_bytes", "vmem_size_bytes"):
            v = getattr(info, name, None)
            if v:
                cap = int(v)
                break
    except Exception:
        pass
    return min(max(cap, 64 << 20), 256 << 20)


def focal_loss(inputs, targets, alpha=ALPHA, gamma=GAMMA, *, _max_block_rows=None):
    """inputs: (N, C) log-probabilities; targets: (N,) integer class indices.

    Returns mean(alpha * (1 - pt)**gamma * CE).  Accumulation and the final
    mean are in float32; the result is cast back to inputs.dtype.
    """
    n, c = inputs.shape
    targets2d = targets.reshape(n, 1).astype(jnp.int32)

    isz = jnp.dtype(inputs.dtype).itemsize
    c_pad = ((c + 127) // 128) * 128            # lane-padded width in VMEM

    cap = _vmem_capacity_bytes()
    # Budget for the double-buffered pipeline tiles: ~60% of physical VMEM
    # (room left for Mosaic temporaries / spills), capped at 96 MiB.
    budget = min(int(cap * 0.6), 96 << 20)

    # True per-row VMEM cost: double-buffered input tile (lane-padded C) plus
    # double-buffered (rows, 1) int32 targets tile (lane-padded to 128).
    bytes_per_row = 2 * c_pad * isz + 2 * 128 * 4

    rows_cap = budget // bytes_per_row
    if _max_block_rows is not None:             # test hook for tiny shapes
        rows_cap = min(rows_cap, _max_block_rows)
    rows_cap = max(8, (int(rows_cap) // 8) * 8)
    rows_cap = min(rows_cap, 1 << 16)

    # In-kernel compute chunk: keep chunk temporaries around ~256 KiB (f32) so
    # the elementwise chain stays in vregs / tiny VMEM temps.
    sub_n = max(8, min(1024, (65536 // c_pad) // 8 * 8))
    n_pad8 = ((n + 7) // 8) * 8
    sub_n = min(sub_n, rows_cap, n_pad8)

    block_n = max(sub_n, (rows_cap // sub_n) * sub_n)
    block_n = min(block_n, ((n + sub_n - 1) // sub_n) * sub_n)
    assert block_n % sub_n == 0 and block_n % 8 == 0

    num_tiles = int(pl.cdiv(n, block_n))
    # Always split two ways when there is more than one tile so both v7x
    # TensorCores get work even for odd tile counts (neutral on single-core
    # v5e/v6e).  The clamped index_map keeps the extra step in bounds.
    num_splits = 2 if num_tiles >= 2 else 1
    tiles_per_split = int(pl.cdiv(num_tiles, num_splits))
    last_tile = num_tiles - 1

    def tile_map(si, ti):
        return (jnp.minimum(si * tiles_per_split + ti, last_tile), 0)

    kernel = functools.partial(
        _focal_loss_kernel,
        gamma=float(gamma), n_rows=int(n), c=int(c),
        block_n=int(block_n), sub_n=int(sub_n),
        tiles_per_split=tiles_per_split,
    )

    # VMEM: pipeline buffers + per-chunk temporaries + accumulator + headroom.
    buf_bytes = block_n * bytes_per_row
    temp_bytes = 6 * sub_n * c_pad * 4 + sub_n * 128 * 4
    vmem_limit = buf_bytes + temp_bytes + (4 << 20)
    vmem_limit = int(min(max(vmem_limit, 16 << 20), cap - (8 << 20)))

    cost = pl.CostEstimate(
        flops=3 * n * c + 12 * n,
        transcendentals=n,
        bytes_accessed=n * c * isz + n * 4 + num_splits * 8 * 128 * 4,
    )

    partials = pl.pallas_call(
        kernel,
        out_shape=jax.ShapeDtypeStruct((num_splits, 8, 128), jnp.float32),
        grid=(num_splits, tiles_per_split),
        in_specs=[
            pl.BlockSpec((block_n, c), tile_map),
            pl.BlockSpec((block_n, 1), tile_map),
        ],
        out_specs=pl.BlockSpec((1, 8, 128), lambda si, ti: (si, 0, 0)),
        scratch_shapes=[pltpu.VMEM((sub_n, 1), jnp.float32)],
        compiler_params=pltpu.CompilerParams(
            dimension_semantics=("parallel", "arbitrary"),
            vmem_limit_bytes=vmem_limit,
        ),
        cost_estimate=cost,
    )(inputs, targets2d)

    total = jnp.sum(partials[:, 0, 0])
    loss = total * jnp.float32(alpha) / jnp.float32(n)   # f32 accumulation
    return loss.astype(inputs.dtype)                     # PyTorch-style output dtype


def _reference(log_probs, targets, alpha=ALPHA, gamma=GAMMA):
    lp = log_probs.astype(jnp.float32)
    ce = -jnp.take_along_axis(lp, targets[:, None].astype(jnp.int32), axis=1)[:, 0]
    pt = jnp.exp(-ce)
    return jnp.mean(alpha * (1.0 - pt) ** gamma * ce)


if __name__ == "__main__":
    key = jax.random.PRNGKey(0)

    # Case 1: tiny f32 (single tile, single split, single chunk).
    k1, k2, key = jax.random.split(key, 3)
    n1, c1 = 8, 32
    lp1 = jax.nn.log_softmax(jax.random.normal(k1, (n1, c1), jnp.float32), axis=-1)
    tg1 = jax.random.randint(k2, (n1,), 0, c1, dtype=jnp.int32)
    out1 = jax.block_until_ready(focal_loss(lp1, tg1))
    ref1 = _reference(lp1, tg1)
    assert jnp.allclose(out1, ref1, rtol=1e-5, atol=1e-6), (out1, ref1)

    # Case 2: f32, forced small tiles -> 5 tiles, 2 "parallel" splits with an
    # odd tile count (exercises the clamped index_map + global-row mask).
    k1, k2, key = jax.random.split(key, 3)
    n2, c2 = 200, 48
    lp2 = jax.nn.log_softmax(jax.random.normal(k1, (n2, c2), jnp.float32), axis=-1)
    tg2 = jax.random.randint(k2, (n2,), 0, c2, dtype=jnp.int32)
    out2 = jax.block_until_ready(focal_loss(lp2, tg2, _max_block_rows=48))
    ref2 = _reference(lp2, tg2)
    assert jnp.allclose(out2, ref2, rtol=1e-5, atol=1e-6), (out2, ref2)

    # Case 3: bf16 inputs (native-dtype gather), multi-chunk tile + padded rows.
    k1, k2, key = jax.random.split(key, 3)
    n3, c3 = 2000, 48
    lp3 = jax.nn.log_softmax(jax.random.normal(k1, (n3, c3), jnp.float32),
                             axis=-1).astype(jnp.bfloat16)
    tg3 = jax.random.randint(k2, (n3,), 0, c3, dtype=jnp.int32)
    out3 = jax.block_until_ready(focal_loss(lp3, tg3))
    ref3 = _reference(lp3, tg3)
    assert jnp.allclose(out3.astype(jnp.float32), ref3, rtol=2e-2, atol=2e-3), (out3, ref3)

    print("KERNEL_OK")
</pallas_src>

<mosaic_0001>
module attributes {stable_mosaic.version = 11 : i64} {
  func.func @_focal_loss_kernel(%arg0: i32, %arg1: i32, %arg2: memref<8x32xf32, #tpu.memory_space<vmem>>, %arg3: memref<8x1xi32, #tpu.memory_space<vmem>>, %arg4: memref<1x8x128xf32, #tpu.memory_space<vmem>>, %arg5: memref<8x1xf32, #tpu.memory_space<vmem>>) attributes {dimension_semantics = [#tpu.dimension_semantics<parallel>, #tpu.dimension_semantics<arbitrary>], iteration_bounds = array<i64: 1, 1>, scalar_prefetch = 0 : i64, scratch_operands = 1 : i64, tpu.core_type = #tpu.core_type<tc>, window_params = [{transform_indices = @transform_0, window_bounds = array<i64: 8, 32>}, {transform_indices = @transform_1, window_bounds = array<i64: 8, 1>}, {transform_indices = @transform_2, window_bounds = array<i64: 1, 8, 128>}]} {
    %c0_i32 = arith.constant 0 : i32
    %0 = arith.cmpi eq, %arg1, %c0_i32 : i32
    %1 = arith.extui %0 : i1 to i32
    %c0_i32_0 = arith.constant 0 : i32
    %2 = arith.cmpi ne, %1, %c0_i32_0 : i32
    scf.if %2 {
      %cst_16 = arith.constant 0.000000e+00 : f32
      %36 = vector.broadcast %cst_16 : f32 to vector<8x1xf32>
      %c0_17 = arith.constant 0 : index
      %c0_18 = arith.constant 0 : index
      %37 = vector.load %arg5[%c0_17, %c0_18] : memref<8x1xf32, #tpu.memory_space<vmem>>, vector<8x1xf32>
      tpu.vector_store %arg5[%c0_17, %c0_18], %36 {strides = array<i32>} : memref<8x1xf32, #tpu.memory_space<vmem>>, vector<8x1xf32>,
    } else {
    }
    %c1_i32 = arith.constant 1 : i32
    %3 = arith.muli %arg0, %c1_i32 : i32
    %4 = arith.addi %3, %arg1 : i32
    %c8_i32 = arith.constant 8 : i32
    %5 = arith.muli %4, %c8_i32 : i32
    %6 = tpu.iota {dimensions = array<i32: 1>} : vector<8x32xi32>
    %7 = tpu.iota {dimensions = array<i32: 0>} : vector<8x1xi32>
    %c0 = arith.constant 0 : index
    %c0_1 = arith.constant 0 : index
    %8 = vector.load %arg2[%c0, %c0_1] : memref<8x32xf32, #tpu.memory_space<vmem>>, vector<8x32xf32>
    %c0_2 = arith.constant 0 : index
    %c0_3 = arith.constant 0 : index
    %9 = vector.load %arg3[%c0_2, %c0_3] : memref<8x1xi32, #tpu.memory_space<vmem>>, vector<8x1xi32>
    %10 = vector.broadcast %9 : vector<8x1xi32> to vector<8x32xi32>
    %11 = arith.cmpi eq, %6, %10 : vector<8x32xi32>
    %cst = arith.constant 0.000000e+00 : f32
    %12 = vector.broadcast %cst : f32 to vector<8x32xf32>
    %13 = arith.select %11, %8, %12 : vector<8x32xi1>, vector<8x32xf32>
    %cst_4 = arith.constant dense<0.000000e+00> : vector<8xf32>
    %14 = vector.multi_reduction <add>, %13, %cst_4 [1] : vector<8x32xf32> to vector<8xf32>
    %15 = vector.shape_cast %14 : vector<8xf32> to vector<8x1xf32>
    %c0_i32_5 = arith.constant 0 : i32
    %16 = arith.addi %5, %c0_i32_5 : i32
    %17 = vector.broadcast %16 : i32 to vector<8x1xi32>
    %18 = arith.addi %17, %7 : vector<8x1xi32>
    %c8_i32_6 = arith.constant 8 : i32
    %19 = vector.broadcast %c8_i32_6 : i32 to vector<8x1xi32>
    %20 = arith.cmpi slt, %18, %19 : vector<8x1xi32>
    %cst_7 = arith.constant 0.000000e+00 : f32
    %21 = vector.broadcast %cst_7 : f32 to vector<8x1xf32>
    %22 = arith.select %20, %15, %21 : vector<8x1xi1>, vector<8x1xf32>
    %cst_8 = arith.constant 0.000000e+00 : f32
    %23 = vector.broadcast %cst_8 : f32 to vector<8x1xf32>
    %24 = arith.subf %23, %22 : vector<8x1xf32>
    %25 = math.exp %22 : vector<8x1xf32>
    %cst_9 = arith.constant 1.000000e+00 : f32
    %26 = vector.broadcast %cst_9 : f32 to vector<8x1xf32>
    %27 = arith.subf %26, %25 : vector<8x1xf32>
    %28 = arith.mulf %27, %27 : vector<8x1xf32>
    %c0_10 = arith.constant 0 : index
    %c0_11 = arith.constant 0 : index
    %29 = vector.load %arg5[%c0_10, %c0_11] : memref<8x1xf32, #tpu.memory_space<vmem>>, vector<8x1xf32>
    %30 = arith.mulf %28, %24 : vector<8x1xf32>
    %31 = arith.addf %29, %30 : vector<8x1xf32>
    %c0_12 = arith.constant 0 : index
    %c0_13 = arith.constant 0 : index
    %32 = vector.load %arg5[%c0_12, %c0_13] : memref<8x1xf32, #tpu.memory_space<vmem>>, vector<8x1xf32>
    tpu.vector_store %arg5[%c0_12, %c0_13], %31 {strides = array<i32>} : memref<8x1xf32, #tpu.memory_space<vmem>>, vector<8x1xf32>,
    %c0_i32_14 = arith.constant 0 : i32
    %33 = arith.cmpi eq, %arg1, %c0_i32_14 : i32
    %34 = arith.extui %33 : i1 to i32
    %c0_i32_15 = arith.constant 0 : i32
    %35 = arith.cmpi ne, %34, %c0_i32_15 : i32
    scf.if %35 {
      %c0_16 = arith.constant 0 : index
      %c0_17 = arith.constant 0 : index
      %36 = vector.load %arg5[%c0_16, %c0_17] : memref<8x1xf32, #tpu.memory_space<vmem>>, vector<8x1xf32>
      %37 = vector.shape_cast %36 : vector<8x1xf32> to vector<1x8x1xf32>
      %cst_18 = arith.constant dense<0.000000e+00> : vector<1xf32>
      %38 = vector.multi_reduction <add>, %37, %cst_18 [1, 2] : vector<1x8x1xf32> to vector<1xf32>
      %39 = vector.shape_cast %38 : vector<1xf32> to vector<1x1x1xf32>
      %40 = vector.extract %39[0, 0, 0] : f32 from vector<1x1x1xf32>
      %41 = vector.broadcast %40 : f32 to vector<1x8x128xf32>
      %c0_19 = arith.constant 0 : index
      %c0_20 = arith.constant 0 : index
      %c0_21 = arith.constant 0 : index
      %42 = vector.load %arg4[%c0_19, %c0_20, %c0_21] : memref<1x8x128xf32, #tpu.memory_space<vmem>>, vector<1x8x128xf32>
      tpu.vector_store %arg4[%c0_19, %c0_20, %c0_21], %41 {strides = array<i32>} : memref<1x8x128xf32, #tpu.memory_space<vmem>>, vector<1x8x128xf32>,
    } else {
    }
    return
  }
  func.func @transform_0(%arg0: i32, %arg1: i32) -> (i32, i32) {
    %c1_i32 = arith.constant 1 : i32
    %0 = arith.muli %arg0, %c1_i32 : i32
    %1 = arith.addi %0, %arg1 : i32
    %c0_i32 = arith.constant 0 : i32
    %2 = arith.minsi %1, %c0_i32 : i32
    %c0_i32_0 = arith.constant 0 : i32
    %c0_i32_1 = arith.constant 0 : i32
    return %2, %c0_i32_0 : i32, i32
  }
  func.func @transform_1(%arg0: i32, %arg1: i32) -> (i32, i32) {
    %c1_i32 = arith.constant 1 : i32
    %0 = arith.muli %arg0, %c1_i32 : i32
    %1 = arith.addi %0, %arg1 : i32
    %c0_i32 = arith.constant 0 : i32
    %2 = arith.minsi %1, %c0_i32 : i32
    %c0_i32_0 = arith.constant 0 : i32
    %c0_i32_1 = arith.constant 0 : i32
    return %2, %c0_i32_0 : i32, i32
  }
  func.func @transform_2(%arg0: i32, %arg1: i32) -> (i32, i32, i32) {
    %c0_i32 = arith.constant 0 : i32
    %c0_i32_0 = arith.constant 0 : i32
    %c0_i32_1 = arith.constant 0 : i32
    return %arg0, %c0_i32, %c0_i32_0 : i32, i32, i32
  }
}

</mosaic_0001>

<llo_original>
// kernel: tpu_custom_call.1
$region0: #{tpu_custom_call.1}
  #allocation0 [shape = 'u32[]', space=smem, size = 0x4, offset = 0x4, fixed_abs, tag = 'smem constant byte address 0x4 - core index']
  #allocation1 [shape = 'u32[144,128]{1,0:T(1,128)}', space=vmem, size = 0x12000, scoped, tag = 'internal scratch']
  #allocation2 [shape = 'f32[8,1]{1,0:T(8,128)}', space=vmem, size = 0x1000, scoped, tag = 'scratch operand']
  %s0 = inlined_call_operand.vmem [shape: f32[8,32], index: 0, kind: input, shape index: {}]
  %s1 = inlined_call_operand.vmem [shape: s32[8,1], index: 1, kind: input, shape index: {}]
  %s2 = inlined_call_operand.hbm [shape: f32[1,8,128], index: 2, kind: output, shape index: {}]
  %s3 = sld [smem:[#allocation0]]
  $region26: #{tpu_custom_call.1} parent=0
    _
  %s5 = ssub.s32 1, %s3
  %s6 = scalar_select 0, %s5, %s3
  $region1: #{tpu_custom_call.1} parent=0
    #allocation3 [shape = 'u8[4096]{0}', space=vmem, size = 0x1000, scoped, tag = 'output window, operand 0, single buffered']
    #allocation4 [shape = 's32[1]{0}', space=sflag, size = 0x4, scoped, tag = 'scoped memory for tpu_custom_call.1']
    %7 = vsyncpa [#allocation4], 0
    // Predicated region
    $region2: #{tpu_custom_call.1} parent=1 // pred_check
      _
    $region3: #{tpu_custom_call.1} parent=1 // pred_check_branch
      %9 = sbr.rel (0) target = $region5
    $region4: #{tpu_custom_call.1} parent=1 // pred_region
      %s10 = sadd.s32 0, 0
      %p11 = scmp.lt.s32.totalorder %s10, 0
      %s12 = scalar_select %p11, %s10, 0
      %p13 = scmp.lt.s32.totalorder %s12, 0
      %s14 = scalar_select %p13, %s12, 0
      %s15 = smul.addr %s14, 8
      %s16 = scalar_lea.vmem %s0, %s15
      %s17 = sadd.s32 0, 0
      %p18 = scmp.lt.s32.totalorder %s17, 0
      %s19 = scalar_select %p18, %s17, 0
    $region5: #{tpu_custom_call.1} parent=1 // pred_fallthru
      _
    // Predicated region
    $region6: #{tpu_custom_call.1} parent=1 // pred_check
      _
    $region7: #{tpu_custom_call.1} parent=1 // pred_check_branch
      %21 = sbr.rel (0) target = $region9
    $region8: #{tpu_custom_call.1} parent=1 // pred_region
      %s22 = sadd.s32 0, 0
      %p23 = scmp.lt.s32.totalorder %s22, 0
      %s24 = scalar_select %p23, %s22, 0
      %p25 = scmp.lt.s32.totalorder %s24, 0
      %s26 = scalar_select %p25, %s24, 0
      %s27 = smul.addr %s26, 8
      %s28 = scalar_lea.vmem %s1, %s27
      %s29 = sadd.s32 0, 0
      %p30 = scmp.lt.s32.totalorder %s29, 0
      %s31 = scalar_select %p30, %s29, 0
    $region9: #{tpu_custom_call.1} parent=1 // pred_fallthru
      _
    %s32 = sadd.s32 0, 0
    %p33 = scmp.lt.s32.totalorder %s32, 0
    %s34 = scalar_select %p33, %s32, 0
    %p35 = scmp.lt.s32.totalorder %s34, 0
    %s36 = scalar_select %p35, %s34, 0
    %s37 = smul.addr %s36, 8
    %s38 = scalar_lea.vmem %s0, %s37
    %s39 = sadd.s32 0, 0
    %p40 = scmp.lt.s32.totalorder %s39, 0
    %s41 = scalar_select %p40, %s39, 0
    %p42 = scmp.lt.s32.totalorder %s41, 0
    %s43 = scalar_select %p42, %s41, 0
    %s44 = smul.addr %s43, 8
    %s45 = scalar_lea.vmem %s1, %s44
    %s46 = sadd.s32 0, 0
    %p47 = scmp.lt.s32.totalorder %s46, 0
    %s48 = scalar_select %p47, %s46, 0
    %p49 = scmp.lt.s32.totalorder %s48, 0
    %s50 = scalar_select %p49, %s48, 0
    %s51 = smul.addr %s50, 8
    %s52 = scalar_lea.vmem %s0, %s51
    %s53 = sadd.s32 0, 0
    %p54 = scmp.lt.s32.totalorder %s53, 0
    %s55 = scalar_select %p54, %s53, 0
    %s56 = sadd.s32 0, 0
    %p57 = scmp.lt.s32.totalorder %s56, 0
    %s58 = scalar_select %p57, %s56, 0
    %p59 = scmp.lt.s32.totalorder %s58, 0
    %s60 = scalar_select %p59, %s58, 0
    %s61 = smul.addr %s60, 8
    %s62 = scalar_lea.vmem %s1, %s61
    %s63 = sadd.s32 0, 0
    %p64 = scmp.lt.s32.totalorder %s63, 0
    %s65 = scalar_select %p64, %s63, 0
    %p66 = scmp.eq.s32.totalorder 0, 0
    // Predicated region
    $region10: #{tpu_custom_call.1} parent=1 // pred_check
      %p67 = pneg %p66
    $region11: #{tpu_custom_call.1} parent=1 // pred_check_branch
      %69 = sbr.rel (%p67) target = $region13
    $region12: #{tpu_custom_call.1} parent=1 // pred_region
      %vm70 = vcmask 7168
      %71 = vst.msk [vmem:[#allocation2] sm:$0xff] %vm70, 0.0
    $region13: #{tpu_custom_call.1} parent=1 // pred_fallthru
      _
    %s72 = sadd.s32 0, 0
    %s73 = smul.u32 %s72, 8
    %v74 = vlaneseq
    %v75 = vand.u32 %v74, 127
    %v76 = vlaneseq
    %v77 = vshrl.u32 %v76, 7
    %v78 = vld [vmem:[%s52] sm:$0xff]
    %v79 = vld [vmem:[%s62] sm:$0xff]
    %80 = vset.pattern.permute.xlu0 0
    %81 = vperm.xlu0 %80, %v79
    %v82 = vpop.permute.xlu0 %81
    %vm83 = vcmp.eq.s32.totalorder %v75, %v82
    %v84 = vsel %vm83, %v78, 0.0
    %vm85 = vcmask 261120
    %v86 = vsel %vm85, %v84, 0.0
    %87 = vadd.xlane.f32.xlu0 %v86
    %v88 = vpop.xlane.xlu0 %87
    %v89 = vstv %s73
    %v90 = vadd.s32 %v89, %v77
    %vm91 = vcmp.lt.s32.totalorder %v90, 8
    %v92 = vsel %vm91, %v88, 0.0
    %v93 = vsub.f32 0.0, %v92
    %v94 = vmul.f32 %v92, 1.442695
    %v95 = vpow.pop %v94
    %v96 = vsub.f32 1.0, %v95
    %v97 = vmul.f32 %v96, %v96
    %v98 = vld [vmem:[#allocation2] sm:$0xff]
    %v99 = vmul.f32 %v97, %v93
    %v100 = vadd.f32 %v98, %v99
    %vm101 = vcmask 7168
    %102 = vst.msk [vmem:[#allocation2] sm:$0xff] %vm101, %v100
    // Predicated region
    $region14: #{tpu_custom_call.1} parent=1 // pred_check
      %p103 = pneg %p66
    $region15: #{tpu_custom_call.1} parent=1 // pred_check_branch
      %105 = sbr.rel (%p103) target = $region17
    $region16: #{tpu_custom_call.1} parent=1 // pred_region
      %v106 = vld [vmem:[#allocation2] sm:$0xff]
      %v107 = vsel %vm101, %v106, 0.0
      %108 = vadd.xlane.f32.xlu0 %v107
      %v109 = vpop.xlane.xlu0 %108
      %v110 = vrot.slane %v109, 4
      %v111 = vadd.f32 %v109, %v110
      %v112 = vrot.slane %v111, 2
      %v113 = vadd.f32 %v111, %v112
      %v114 = vrot.slane %v113, 1
      %v115 = vadd.f32 %v113, %v114
      %s116 = vtos %v115
      %v117 = vstv %s116
      %118 = vst [vmem:[#allocation3] sm:$0xff] %v117
    $region17: #{tpu_custom_call.1} parent=1 // pred_fallthru
      _
    // Predicated region
    $region18: #{tpu_custom_call.1} parent=1 // pred_check
      _
    $region19: #{tpu_custom_call.1} parent=1 // pred_check_branch
      %120 = sbr.rel (0) target = $region21
    $region20: #{tpu_custom_call.1} parent=1 // pred_region
      %s122 = ssub.s32 128, 128
      %123 = vsyncadd [#allocation4], %s122
      %s125 = sshll.u32 [#allocation3], 4
      %s126 = int_to_ptr.vmem [resolvable:$true] %s125
      %128 = dma.vmem_to_hbm [thread:$0]  %s126, 128, %s2, [#allocation4]
    $region21: #{tpu_custom_call.1} parent=1 // pred_fallthru
      _
    // Predicated region
    $region22: #{tpu_custom_call.1} parent=1 // pred_check
      _
    $region23: #{tpu_custom_call.1} parent=1 // pred_check_branch
      %130 = sbr.rel (0) target = $region25
    $region24: #{tpu_custom_call.1} parent=1 // pred_region
      %131 = dma.done [#allocation4], 128
    $region25: #{tpu_custom_call.1} parent=1 // pred_fallthru
      _
    %132 = vsyncpa [#allocation4], 1

</llo_original>
